<compile_context>
chip_gen: v6e
topology: v6e:2x2x1
jax: 0.10.0
libtpu: 0.0.40
codegen_flags: <defaults>
</compile_context>

<pallas_src>
import numpy as np
import jax
import jax.numpy as jnp
from jax.experimental import pallas as pl
from jax.experimental.pallas import tpu as pltpu


# -----------------------------------------------------------------------------
# Generation-gated tiling / VMEM constants
# -----------------------------------------------------------------------------
def _vmem_capacity_bytes():
    try:
        cap = int(pltpu.get_tpu_info().vmem_capacity_bytes)
        if cap > 0:
            return cap
    except Exception:
        pass
    return 64 * 1024 * 1024          # conservative (v7x-sized) default


_VMEM_CAP = _vmem_capacity_bytes()
_BIG_VMEM = _VMEM_CAP >= 100 * 1024 * 1024     # v5e / v6e (128 MiB physical)
_TM = 512 if _BIG_VMEM else 256                # target output-row tile
_TN = 256                                      # target output-channel tile
_MM_VMEM = (64 if _BIG_VMEM else 40) * 1024 * 1024
_TAP_VMEM = (96 if _BIG_VMEM else 48) * 1024 * 1024
_POOL_VMEM = 32 * 1024 * 1024
_TAP_MAX_ROWS = 8192                           # per-band row cap (bounds f32 acc)


def _round_up(x, m):
    return ((x + m - 1) // m) * m


def _balanced_tile(dim, target, mult):
    """Evenly sized tiles (<= ~target), full-dim when it already fits."""
    if dim <= target:
        return dim
    nblocks = -(-dim // target)
    return min(dim, _round_up(-(-dim // nblocks), mult))


# -----------------------------------------------------------------------------
# Fused matmul + bias + ReLU Pallas kernel (BN scale pre-folded into weights)
# -----------------------------------------------------------------------------
def _mm_bias_relu_kernel(a_ref, b_ref, bias_ref, o_ref):
    acc = jnp.dot(a_ref[...], b_ref[...], preferred_element_type=jnp.float32)
    y = acc + bias_ref[...]                    # (1, tn) f32 broadcast
    o_ref[...] = jnp.maximum(y, 0.0).astype(o_ref.dtype)


def matmul_bias_relu(a, b, bias, out_dtype=jnp.bfloat16):
    """relu(a @ b + bias); a:(M,K) bf16, b:(K,N) bf16, bias:(1,N) f32."""
    M, K = a.shape
    N = b.shape[1]
    assert b.shape[0] == K and bias.shape == (1, N)

    if K % 8:                                  # only the K=27 stem conv
        Kp = _round_up(K, 8)
        a = jnp.pad(a, ((0, 0), (0, Kp - K)))
        b = jnp.pad(b, ((0, Kp - K), (0, 0)))
        K = Kp

    tm = _balanced_tile(M, _TM, 16)
    tn = _balanced_tile(N, _TN, 128)
    grid = (pl.cdiv(M, tm), pl.cdiv(N, tn))

    cost = pl.CostEstimate(
        flops=2 * M * N * K,
        transcendentals=0,
        bytes_accessed=int(a.size) * a.dtype.itemsize
                       + int(b.size) * b.dtype.itemsize
                       + N * 4 + M * N * jnp.dtype(out_dtype).itemsize)

    return pl.pallas_call(
        _mm_bias_relu_kernel,
        out_shape=jax.ShapeDtypeStruct((M, N), out_dtype),
        grid_spec=pltpu.PrefetchScalarGridSpec(
            num_scalar_prefetch=0,
            grid=grid,
            in_specs=[
                pl.BlockSpec((tm, K), lambda i, j: (i, 0)),
                pl.BlockSpec((K, tn), lambda i, j: (0, j)),
                pl.BlockSpec((1, tn), lambda i, j: (0, j)),
            ],
            out_specs=pl.BlockSpec((tm, tn), lambda i, j: (i, j)),
        ),
        compiler_params=pltpu.CompilerParams(
            dimension_semantics=("parallel", "parallel"),
            vmem_limit_bytes=_MM_VMEM),
        cost_estimate=cost,
    )(a, b, bias)


# -----------------------------------------------------------------------------
# Stride-1 kxk conv without HBM im2col: flattened tap-sum kernel
# -----------------------------------------------------------------------------
def _make_tap_conv_kernel(offsets, cin):
    def kernel(x_ref, w_ref, b_ref, o_ref):
        m = o_ref.shape[1]
        acc = None
        for t, off in enumerate(offsets):
            a = x_ref[0, off:off + m, :]                       # (m, cin) bf16
            wt = w_ref[t * cin:(t + 1) * cin, :]               # (cin, tn) bf16
            d = jnp.dot(a, wt, preferred_element_type=jnp.float32)
            acc = d if acc is None else acc + d
        o_ref[0] = jnp.maximum(acc + b_ref[...], 0.0).astype(o_ref.dtype)
    return kernel


def _conv2d_tap_s1(x, p):
    """k>1, stride-1 Conv+BN+ReLU on a flattened (Hp*Wp, Cin) window; no patches."""
    b, bias = p["b"], p["bias"]
    (kh, kw), (ph, pw) = p["ksize"], p["padding"]
    n, h, w, cin = x.shape
    cout = b.shape[1]
    ho, wo = h + 2 * ph - kh + 1, w + 2 * pw - kw + 1
    wp = w + 2 * pw
    e = 1 if kw > 1 else 0                     # extra bottom row for the over-read

    # Split tall images into output-row bands so the f32 accumulator stays small.
    if ho * wp <= _TAP_MAX_ROWS:
        bh, nb = ho, 1
    else:
        bh = max(1, _TAP_MAX_ROWS // wp)
        nb = -(-ho // bh)
    band_in = bh + kh - 1 + e
    hp_need = (nb - 1) * bh + band_in

    xpad = jnp.pad(x, ((0, 0), (ph, hp_need - h - ph), (pw, pw), (0, 0)))
    if nb == 1:
        xb = xpad.reshape(n, band_in * wp, cin)
    else:
        bands = [xpad[:, k * bh:k * bh + band_in] for k in range(nb)]
        xb = jnp.stack(bands, axis=1).reshape(n * nb, band_in * wp, cin)

    beff = n * nb
    m_band = bh * wp
    l_band = band_in * wp
    offsets = tuple(di * wp + dj for di in range(kh) for dj in range(kw))
    tn = _balanced_tile(cout, 256, 128)
    grid = (beff, pl.cdiv(cout, tn))

    cost = pl.CostEstimate(
        flops=2 * beff * m_band * kh * kw * cin * cout,
        transcendentals=0,
        bytes_accessed=int(xb.size) * 2 + int(b.size) * 2 + cout * 4
                       + beff * m_band * cout * 2)

    out = pl.pallas_call(
        _make_tap_conv_kernel(offsets, cin),
        out_shape=jax.ShapeDtypeStruct((beff, m_band, cout), jnp.bfloat16),
        grid_spec=pltpu.PrefetchScalarGridSpec(
            num_scalar_prefetch=0,
            grid=grid,
            in_specs=[
                pl.BlockSpec((1, l_band, cin), lambda i, j: (i, 0, 0)),
                pl.BlockSpec((kh * kw * cin, tn), lambda i, j: (0, j)),
                pl.BlockSpec((1, tn), lambda i, j: (0, j)),
            ],
            out_specs=pl.BlockSpec((1, m_band, tn), lambda i, j: (i, 0, j)),
        ),
        compiler_params=pltpu.CompilerParams(
            dimension_semantics=("parallel", "parallel"),
            vmem_limit_bytes=_TAP_VMEM),
        cost_estimate=cost,
    )(xb, b, bias)

    out = out.reshape(n, nb * bh, wp, cout)[:, :ho, :wo, :]
    return out


# -----------------------------------------------------------------------------
# Pooling kernels
# -----------------------------------------------------------------------------
def _pool_max_kernel(p_ref, o_ref):
    o_ref[...] = jnp.max(p_ref[...].astype(jnp.float32), axis=1).astype(o_ref.dtype)


def _pool_mean_kernel(p_ref, o_ref):
    o_ref[...] = jnp.mean(p_ref[...].astype(jnp.float32), axis=1).astype(o_ref.dtype)


def _window_reduce(patches, kind, out_dtype=None):
    """Reduce (M, W, C) over the window axis W with max / mean (patch path)."""
    M, W, C = patches.shape
    if out_dtype is None:
        out_dtype = patches.dtype
    bytes_per_row = W * C * patches.dtype.itemsize
    tm = (8 * 1024 * 1024 // max(1, bytes_per_row)) // 16 * 16
    tm = max(16, min(1024, tm))
    if tm >= M:
        tm = M
    kernel = _pool_max_kernel if kind == "max" else _pool_mean_kernel
    return pl.pallas_call(
        kernel,
        out_shape=jax.ShapeDtypeStruct((M, C), out_dtype),
        grid_spec=pltpu.PrefetchScalarGridSpec(
            num_scalar_prefetch=0,
            grid=(pl.cdiv(M, tm),),
            in_specs=[pl.BlockSpec((tm, W, C), lambda i: (i, 0, 0))],
            out_specs=pl.BlockSpec((tm, C), lambda i: (i, 0)),
        ),
        compiler_params=pltpu.CompilerParams(
            dimension_semantics=("parallel",),
            vmem_limit_bytes=_POOL_VMEM),
    )(patches)


def _make_pool_avg_kernel(offsets, inv):
    def kernel(x_ref, o_ref):
        m = o_ref.shape[1]
        acc = x_ref[0, offsets[0]:offsets[0] + m, :].astype(jnp.float32)
        for off in offsets[1:]:
            acc = acc + x_ref[0, off:off + m, :].astype(jnp.float32)
        o_ref[0] = (acc * inv).astype(o_ref.dtype)
    return kernel


def _avg_pool_3x3_s1_p1_flat(x):
    """F.avg_pool2d(x, 3, 1, 1) (count_include_pad) via 9 shifted adds in VMEM."""
    n, h, w, c = x.shape
    wp = w + 2
    hp = h + 3                                  # (1, 2) padding in H for over-read
    xpad = jnp.pad(x, ((0, 0), (1, 2), (1, 1), (0, 0)))
    xf = xpad.reshape(n, hp * wp, c)
    offsets = tuple(di * wp + dj for di in range(3) for dj in range(3))
    m_out = h * wp
    out = pl.pallas_call(
        _make_pool_avg_kernel(offsets, 1.0 / 9.0),
        out_shape=jax.ShapeDtypeStruct((n, m_out, c), x.dtype),
        grid_spec=pltpu.PrefetchScalarGridSpec(
            num_scalar_prefetch=0,
            grid=(n,),
            in_specs=[pl.BlockSpec((1, hp * wp, c), lambda i: (i, 0, 0))],
            out_specs=pl.BlockSpec((1, m_out, c), lambda i: (i, 0, 0)),
        ),
        compiler_params=pltpu.CompilerParams(
            dimension_semantics=("parallel",),
            vmem_limit_bytes=_POOL_VMEM),
    )(xf)
    return out.reshape(n, h, wp, c)[:, :, :w, :]


# -----------------------------------------------------------------------------
# Glue: patch extraction (stride-2 convs / max pool only) + layer wrappers
# -----------------------------------------------------------------------------
def _extract_patches(x, kh, kw, sh, sw, ph, pw, pad_value=0.0):
    """x: (N, H, W, C) -> (N, Ho, Wo, kh*kw, C)."""
    if ph or pw:
        x = jnp.pad(x, ((0, 0), (ph, ph), (pw, pw), (0, 0)),
                    constant_values=pad_value)
    _, H, W, _ = x.shape
    Ho = (H - kh) // sh + 1
    Wo = (W - kw) // sw + 1
    cols = []
    for i in range(kh):
        for j in range(kw):
            cols.append(x[:, i:i + sh * Ho:sh, j:j + sw * Wo:sw, :])
    return jnp.stack(cols, axis=3)


def conv2d_bn_relu(x, p):
    """BasicConv2d: Conv2d(bias=False) + BatchNorm2d(eps=1e-3) + ReLU (NHWC, bf16)."""
    (kh, kw), (sh, sw), (ph, pw) = p["ksize"], p["stride"], p["padding"]
    x = x.astype(jnp.bfloat16)
    n, h, w, cin = x.shape
    if (kh, kw) == (1, 1) and (sh, sw) == (1, 1) and (ph, pw) == (0, 0):
        out = matmul_bias_relu(x.reshape(n * h * w, cin), p["b"], p["bias"])
        return out.reshape(n, h, w, -1)
    if (sh, sw) == (1, 1):
        try:
            return _conv2d_tap_s1(x, p)
        except Exception:
            pass                               # fall back to the proven im2col path
    patches = _extract_patches(x, kh, kw, sh, sw, ph, pw, 0.0)
    _, ho, wo = patches.shape[:3]
    a = patches.reshape(n * ho * wo, kh * kw * cin)
    out = matmul_bias_relu(a, p["b"], p["bias"])
    return out.reshape(n, ho, wo, -1)


def fused_conv1x1(x, plist):
    """Several 1x1 BasicConv2d on the same input -> one wide matmul, then split."""
    for p in plist:
        assert p["ksize"] == (1, 1) and p["stride"] == (1, 1) and p["padding"] == (0, 0)
    b = jnp.concatenate([p["b"] for p in plist], axis=1)
    bias = jnp.concatenate([p["bias"] for p in plist], axis=1)
    n, h, w, cin = x.shape
    out = matmul_bias_relu(x.astype(jnp.bfloat16).reshape(n * h * w, cin), b, bias)
    outs, c0 = [], 0
    for p in plist:
        c = p["b"].shape[1]
        outs.append(out[:, c0:c0 + c].reshape(n, h, w, c))
        c0 += c
    return outs


def max_pool2d(x, k=3, stride=2, padding=0):
    # TODO(synk): stride-2 max pool still materializes 9x patches in HBM.
    patches = _extract_patches(x, k, k, stride, stride, padding, padding, -3.0e38)
    n, ho, wo, win, c = patches.shape
    out = _window_reduce(patches.reshape(n * ho * wo, win, c), "max")
    return out.reshape(n, ho, wo, c)


def avg_pool2d_3x3_s1_p1(x):
    try:
        return _avg_pool_3x3_s1_p1_flat(x)
    except Exception:
        patches = _extract_patches(x, 3, 3, 1, 1, 1, 1, 0.0)
        n, ho, wo, win, c = patches.shape
        out = _window_reduce(patches.reshape(n * ho * wo, win, c), "mean")
        return out.reshape(n, ho, wo, c)


def global_avg_pool(x):
    # AdaptiveAvgPool2d((1,1)): mean over the full spatial extent, f32 output.
    n, h, w, c = x.shape
    return _window_reduce(x.reshape(n, h * w, c), "mean", out_dtype=jnp.float32)


# -----------------------------------------------------------------------------
# Deterministic parameter construction (BN folded: scale into weights, shift as bias)
# -----------------------------------------------------------------------------
_PARAM_KEY = jax.random.PRNGKey(1234)
_PARAM_CTR = [0]


def _next_key():
    _PARAM_CTR[0] += 1
    return jax.random.fold_in(_PARAM_KEY, _PARAM_CTR[0])


def make_bconv(c_in, c_out, kernel_size, stride=1, padding=0):
    kh, kw = (kernel_size, kernel_size) if isinstance(kernel_size, int) else kernel_size
    stride = (stride, stride) if isinstance(stride, int) else tuple(stride)
    padding = (padding, padding) if isinstance(padding, int) else tuple(padding)
    fan_in = c_in * kh * kw
    w = jax.random.normal(_next_key(), (c_out, c_in, kh, kw),
                          jnp.float32) * np.sqrt(2.0 / fan_in)
    gamma = 1.0 + 0.05 * jax.random.normal(_next_key(), (c_out,), jnp.float32)
    beta = 0.05 * jax.random.normal(_next_key(), (c_out,), jnp.float32)
    running_mean = 0.05 * jax.random.normal(_next_key(), (c_out,), jnp.float32)
    running_var = jnp.ones((c_out,), jnp.float32)
    eps = 1e-3  # BatchNorm2d(eps=0.001) inside torchvision BasicConv2d
    scale = gamma / jnp.sqrt(running_var + eps)
    bias = (beta - running_mean * scale).reshape(1, c_out)          # (1, Cout) f32
    w_mat = jnp.transpose(w, (2, 3, 1, 0)).reshape(kh * kw * c_in, c_out)
    b = (w_mat * scale[None, :]).astype(jnp.bfloat16)               # BN scale folded
    return dict(b=b, bias=bias, ksize=(kh, kw), stride=stride, padding=padding)


def make_inception_a(c_in, pool_features):
    return dict(
        branch1x1=make_bconv(c_in, 64, 1),
        branch5x5_1=make_bconv(c_in, 48, 1),
        branch5x5_2=make_bconv(48, 64, 5, padding=2),
        branch3x3dbl_1=make_bconv(c_in, 64, 1),
        branch3x3dbl_2=make_bconv(64, 96, 3, padding=1),
        branch3x3dbl_3=make_bconv(96, 96, 3, padding=1),
        branch_pool=make_bconv(c_in, pool_features, 1),
    )


def apply_inception_a(p, x):
    b1, b5, bd = fused_conv1x1(
        x, [p["branch1x1"], p["branch5x5_1"], p["branch3x3dbl_1"]])
    b5 = conv2d_bn_relu(b5, p["branch5x5_2"])
    bd = conv2d_bn_relu(bd, p["branch3x3dbl_2"])
    bd = conv2d_bn_relu(bd, p["branch3x3dbl_3"])
    bp = conv2d_bn_relu(avg_pool2d_3x3_s1_p1(x), p["branch_pool"])
    return jnp.concatenate([b1, b5, bd, bp], axis=-1)


def make_inception_b(c_in):
    return dict(
        branch3x3=make_bconv(c_in, 384, 3, stride=2),
        branch3x3dbl_1=make_bconv(c_in, 64, 1),
        branch3x3dbl_2=make_bconv(64, 96, 3, padding=1),
        branch3x3dbl_3=make_bconv(96, 96, 3, stride=2),
    )


def apply_inception_b(p, x):
    b3 = conv2d_bn_relu(x, p["branch3x3"])
    bd = conv2d_bn_relu(x, p["branch3x3dbl_1"])
    bd = conv2d_bn_relu(bd, p["branch3x3dbl_2"])
    bd = conv2d_bn_relu(bd, p["branch3x3dbl_3"])
    bp = max_pool2d(x, 3, 2)
    return jnp.concatenate([b3, bd, bp], axis=-1)


def make_inception_c(c_in, c7):
    return dict(
        branch1x1=make_bconv(c_in, 192, 1),
        branch7x7_1=make_bconv(c_in, c7, 1),
        branch7x7_2=make_bconv(c7, c7, (1, 7), padding=(0, 3)),
        branch7x7_3=make_bconv(c7, 192, (7, 1), padding=(3, 0)),
        branch7x7dbl_1=make_bconv(c_in, c7, 1),
        branch7x7dbl_2=make_bconv(c7, c7, (7, 1), padding=(3, 0)),
        branch7x7dbl_3=make_bconv(c7, c7, (1, 7), padding=(0, 3)),
        branch7x7dbl_4=make_bconv(c7, c7, (7, 1), padding=(3, 0)),
        branch7x7dbl_5=make_bconv(c7, 192, (1, 7), padding=(0, 3)),
        branch_pool=make_bconv(c_in, 192, 1),
    )


def apply_inception_c(p, x):
    b1, b7, bd = fused_conv1x1(
        x, [p["branch1x1"], p["branch7x7_1"], p["branch7x7dbl_1"]])
    b7 = conv2d_bn_relu(b7, p["branch7x7_2"])
    b7 = conv2d_bn_relu(b7, p["branch7x7_3"])
    bd = conv2d_bn_relu(bd, p["branch7x7dbl_2"])
    bd = conv2d_bn_relu(bd, p["branch7x7dbl_3"])
    bd = conv2d_bn_relu(bd, p["branch7x7dbl_4"])
    bd = conv2d_bn_relu(bd, p["branch7x7dbl_5"])
    bp = conv2d_bn_relu(avg_pool2d_3x3_s1_p1(x), p["branch_pool"])
    return jnp.concatenate([b1, b7, bd, bp], axis=-1)


def make_inception_d(c_in):
    return dict(
        branch3x3_1=make_bconv(c_in, 192, 1),
        branch3x3_2=make_bconv(192, 320, 3, stride=2),
        branch7x7x3_1=make_bconv(c_in, 192, 1),
        branch7x7x3_2=make_bconv(192, 192, (1, 7), padding=(0, 3)),
        branch7x7x3_3=make_bconv(192, 192, (7, 1), padding=(3, 0)),
        branch7x7x3_4=make_bconv(192, 192, 3, stride=2),
    )


def apply_inception_d(p, x):
    b3, b7 = fused_conv1x1(x, [p["branch3x3_1"], p["branch7x7x3_1"]])
    b3 = conv2d_bn_relu(b3, p["branch3x3_2"])
    b7 = conv2d_bn_relu(b7, p["branch7x7x3_2"])
    b7 = conv2d_bn_relu(b7, p["branch7x7x3_3"])
    b7 = conv2d_bn_relu(b7, p["branch7x7x3_4"])
    bp = max_pool2d(x, 3, 2)
    return jnp.concatenate([b3, b7, bp], axis=-1)


def make_inception_e(c_in):
    return dict(
        branch1x1=make_bconv(c_in, 320, 1),
        branch3x3_1=make_bconv(c_in, 384, 1),
        branch3x3_2a=make_bconv(384, 384, (1, 3), padding=(0, 1)),
        branch3x3_2b=make_bconv(384, 384, (3, 1), padding=(1, 0)),
        branch3x3dbl_1=make_bconv(c_in, 448, 1),
        branch3x3dbl_2=make_bconv(448, 384, 3, padding=1),
        branch3x3dbl_3a=make_bconv(384, 384, (1, 3), padding=(0, 1)),
        branch3x3dbl_3b=make_bconv(384, 384, (3, 1), padding=(1, 0)),
        branch_pool=make_bconv(c_in, 192, 1),
    )


def apply_inception_e(p, x):
    b1, y3, yd = fused_conv1x1(
        x, [p["branch1x1"], p["branch3x3_1"], p["branch3x3dbl_1"]])
    b3 = jnp.concatenate([conv2d_bn_relu(y3, p["branch3x3_2a"]),
                          conv2d_bn_relu(y3, p["branch3x3_2b"])], axis=-1)
    yd = conv2d_bn_relu(yd, p["branch3x3dbl_2"])
    bd = jnp.concatenate([conv2d_bn_relu(yd, p["branch3x3dbl_3a"]),
                          conv2d_bn_relu(yd, p["branch3x3dbl_3b"])], axis=-1)
    bp = conv2d_bn_relu(avg_pool2d_3x3_s1_p1(x), p["branch_pool"])
    return jnp.concatenate([b1, b3, bd, bp], axis=-1)


# -----------------------------------------------------------------------------
# InceptionV3 feature extractor (matches the PyTorch module's forward)
# -----------------------------------------------------------------------------
class InceptionV3:
    DEFAULT_BLOCK_INDEX = 3
    BLOCK_INDEX_BY_DIM = {64: 0, 192: 1, 768: 2, 2048: 3}

    def __init__(self, output_blocks=(DEFAULT_BLOCK_INDEX,),
                 resize_input=True, normalize_input=True):
        self.resize_input = resize_input
        self.normalize_input = normalize_input
        self.output_blocks = sorted(output_blocks)
        self.last_needed_block = max(output_blocks)
        assert self.last_needed_block <= 3, 'Last possible output block index is 3'
        p = {}
        # block 0
        p["Conv2d_1a_3x3"] = make_bconv(3, 32, 3, stride=2)
        p["Conv2d_2a_3x3"] = make_bconv(32, 32, 3)
        p["Conv2d_2b_3x3"] = make_bconv(32, 64, 3, padding=1)
        # block 1
        if self.last_needed_block >= 1:
            p["Conv2d_3b_1x1"] = make_bconv(64, 80, 1)
            p["Conv2d_4a_3x3"] = make_bconv(80, 192, 3)
        # block 2
        if self.last_needed_block >= 2:
            p["Mixed_5b"] = make_inception_a(192, 32)
            p["Mixed_5c"] = make_inception_a(256, 64)
            p["Mixed_5d"] = make_inception_a(288, 64)
            p["Mixed_6a"] = make_inception_b(288)
            p["Mixed_6b"] = make_inception_c(768, 128)
            p["Mixed_6c"] = make_inception_c(768, 160)
            p["Mixed_6d"] = make_inception_c(768, 160)
            p["Mixed_6e"] = make_inception_c(768, 192)
        # block 3
        if self.last_needed_block >= 3:
            p["Mixed_7a"] = make_inception_d(768)
            p["Mixed_7b"] = make_inception_e(1280)
            p["Mixed_7c"] = make_inception_e(2048)
        self.params = p

    def _block0(self, x):
        x = conv2d_bn_relu(x, self.params["Conv2d_1a_3x3"])
        x = conv2d_bn_relu(x, self.params["Conv2d_2a_3x3"])
        x = conv2d_bn_relu(x, self.params["Conv2d_2b_3x3"])
        return max_pool2d(x, 3, 2)

    def _block1(self, x):
        x = conv2d_bn_relu(x, self.params["Conv2d_3b_1x1"])
        x = conv2d_bn_relu(x, self.params["Conv2d_4a_3x3"])
        return max_pool2d(x, 3, 2)

    def _block2(self, x):
        x = apply_inception_a(self.params["Mixed_5b"], x)
        x = apply_inception_a(self.params["Mixed_5c"], x)
        x = apply_inception_a(self.params["Mixed_5d"], x)
        x = apply_inception_b(self.params["Mixed_6a"], x)
        x = apply_inception_c(self.params["Mixed_6b"], x)
        x = apply_inception_c(self.params["Mixed_6c"], x)
        x = apply_inception_c(self.params["Mixed_6d"], x)
        x = apply_inception_c(self.params["Mixed_6e"], x)
        return x

    def _block3(self, x):
        x = apply_inception_d(self.params["Mixed_7a"], x)
        x = apply_inception_e(self.params["Mixed_7b"], x)
        x = apply_inception_e(self.params["Mixed_7c"], x)
        n, _, _, c = x.shape
        return global_avg_pool(x).reshape(n, 1, 1, c)   # NHWC 1x1 spatial, f32

    def __call__(self, inp):
        """inp: (B, 3, H, W), values in (0, 1). Returns list of NCHW f32 features."""
        x = inp.astype(jnp.float32)
        if self.resize_input:
            # F.interpolate(mode='bilinear', align_corners=False): half-pixel centers,
            # matches jax.image.resize 'bilinear' for upsampling.
            x = jax.image.resize(x, (x.shape[0], x.shape[1], 299, 299),
                                 method="bilinear")
        if self.normalize_input:
            ch_scale = jnp.array([0.229 / 0.5, 0.224 / 0.5, 0.225 / 0.5],
                                 jnp.float32).reshape(1, 3, 1, 1)
            ch_shift = jnp.array([(0.485 - 0.5) / 0.5, (0.456 - 0.5) / 0.5,
                                  (0.406 - 0.5) / 0.5],
                                 jnp.float32).reshape(1, 3, 1, 1)
            x = x * ch_scale + ch_shift
        x = jnp.transpose(x, (0, 2, 3, 1)).astype(jnp.bfloat16)   # NCHW -> NHWC bf16
        blocks = [self._block0, self._block1, self._block2, self._block3]
        outp = []
        for idx in range(self.last_needed_block + 1):
            x = blocks[idx](x)
            if idx in self.output_blocks:
                outp.append(jnp.transpose(x, (0, 3, 1, 2)).astype(jnp.float32))
            if idx == self.last_needed_block:
                break
        return outp


if __name__ == "__main__":
    key = jax.random.PRNGKey(0)
    # small input consistent with the module: Bx3xHxW in (0, 1)
    x = jax.random.uniform(key, (2, 3, 16, 16), dtype=jnp.float32)

    model = InceptionV3(output_blocks=(3,), resize_input=True, normalize_input=True)
    feats = model(x)
    feats = [jax.block_until_ready(f) for f in feats]

    assert len(feats) == 1
    assert feats[0].shape == (2, 2048, 1, 1), feats[0].shape
    assert bool(jnp.isfinite(feats[0]).all())
    print("KERNEL_OK")
</pallas_src>

<mosaic_0001>
module attributes {stable_mosaic.version = 11 : i64} {
  func.func @_mm_bias_relu_kernel(%arg0: i32, %arg1: i32, %arg2: memref<256x32xbf16, #tpu.memory_space<vmem>>, %arg3: memref<32x32xbf16, #tpu.memory_space<vmem>>, %arg4: memref<1x32xf32, #tpu.memory_space<vmem>>, %arg5: memref<256x32xbf16, #tpu.memory_space<vmem>>) attributes {dimension_semantics = [#tpu.dimension_semantics<parallel>, #tpu.dimension_semantics<parallel>], iteration_bounds = array<i64: 174, 1>, scalar_prefetch = 0 : i64, scratch_operands = 0 : i64, tpu.core_type = #tpu.core_type<tc>, window_params = [{transform_indices = @transform_0, window_bounds = array<i64: 256, 32>}, {transform_indices = @transform_1, window_bounds = array<i64: 32, 32>}, {transform_indices = @transform_2, window_bounds = array<i64: 1, 32>}, {transform_indices = @transform_3, window_bounds = array<i64: 256, 32>}]} {
    %c0 = arith.constant 0 : index
    %c0_0 = arith.constant 0 : index
    %0 = vector.load %arg2[%c0, %c0_0] : memref<256x32xbf16, #tpu.memory_space<vmem>>, vector<256x32xbf16>
    %c0_1 = arith.constant 0 : index
    %c0_2 = arith.constant 0 : index
    %1 = vector.load %arg3[%c0_1, %c0_2] : memref<32x32xbf16, #tpu.memory_space<vmem>>, vector<32x32xbf16>
    %cst = arith.constant dense<0.000000e+00> : vector<256x32xf32>
    %2 = tpu.matmul %0, %1, %cst {dimension_numbers = #tpu.dot_dimension_numbers<[1], [0], [0], [1], [0, 0, 1, 1], [], []>} : vector<256x32xbf16>, vector<32x32xbf16>, vector<256x32xf32> -> vector<256x32xf32>
    %c0_3 = arith.constant 0 : index
    %c0_4 = arith.constant 0 : index
    %3 = vector.load %arg4[%c0_3, %c0_4] : memref<1x32xf32, #tpu.memory_space<vmem>>, vector<1x32xf32>
    %4 = vector.broadcast %3 : vector<1x32xf32> to vector<256x32xf32>
    %5 = arith.addf %2, %4 : vector<256x32xf32>
    %cst_5 = arith.constant 0.000000e+00 : f32
    %6 = vector.broadcast %cst_5 : f32 to vector<256x32xf32>
    %7 = arith.maximumf %5, %6 : vector<256x32xf32>
    %8 = arith.truncf %7 : vector<256x32xf32> to vector<256x32xbf16>
    %c0_6 = arith.constant 0 : index
    %c0_7 = arith.constant 0 : index
    %9 = vector.load %arg5[%c0_6, %c0_7] : memref<256x32xbf16, #tpu.memory_space<vmem>>, vector<256x32xbf16>
    tpu.vector_store %arg5[%c0_6, %c0_7], %8 {strides = array<i32>} : memref<256x32xbf16, #tpu.memory_space<vmem>>, vector<256x32xbf16>,
    return
  }
  func.func @transform_0(%arg0: i32, %arg1: i32) -> (i32, i32) {
    %c0_i32 = arith.constant 0 : i32
    %c0_i32_0 = arith.constant 0 : i32
    return %arg0, %c0_i32 : i32, i32
  }
  func.func @transform_1(%arg0: i32, %arg1: i32) -> (i32, i32) {
    %c0_i32 = arith.constant 0 : i32
    %c0_i32_0 = arith.constant 0 : i32
    return %c0_i32, %arg1 : i32, i32
  }
  func.func @transform_2(%arg0: i32, %arg1: i32) -> (i32, i32) {
    %c0_i32 = arith.constant 0 : i32
    %c0_i32_0 = arith.constant 0 : i32
    return %c0_i32, %arg1 : i32, i32
  }
  func.func @transform_3(%arg0: i32, %arg1: i32) -> (i32, i32) {
    %c0_i32 = arith.constant 0 : i32
    return %arg0, %arg1 : i32, i32
  }
}

</mosaic_0001>

<llo_original>
// kernel: tpu_custom_call.1
$region0: #{tpu_custom_call.1}
  #allocation0 [shape = 'u32[]', space=smem, size = 0x4, offset = 0x4, fixed_abs, tag = 'smem constant byte address 0x4 - core index']
  #allocation1 [shape = 'u32[144,128]{1,0:T(1,128)}', space=vmem, size = 0x12000, scoped, tag = 'internal scratch']
  %s0 = inlined_call_operand.vmem [shape: bf16[44402,32], index: 0, kind: input, shape index: {}]
  %s1 = inlined_call_operand.vmem [shape: bf16[32,32], index: 1, kind: input, shape index: {}]
  %s2 = inlined_call_operand.vmem [shape: f32[1,32], index: 2, kind: input, shape index: {}]
  %s3 = inlined_call_operand.vmem [shape: bf16[44402,32], index: 3, kind: output, shape index: {}]
  %s4 = sld [smem:[#allocation0]]
  $region89: #{tpu_custom_call.1} parent=0
    _
  %s6 = ssub.s32 1, %s4
  %s7 = scalar_select 0, %s6, %s4
  $region1: #{tpu_custom_call.1} parent=0
    #allocation2 [shape = 'u8[131072]{0}', space=vmem, size = 0x20000, scoped, tag = 'output window, operand 0']
    loop: start=0, step=1, limit=176
    $region2: #{tpu_custom_call.1} parent=1 // loop_pre_header
      _
    $region3: #{tpu_custom_call.1} parent=1 // loop_header
      %s9 = sphi 0, %s13
      %p10 = scmp.ge.s32.totalorder %s9, 176
      %s16 = sphi 0, %s28
      %s17 = sphi 0, %s24
      %s18 = sphi 0, %s16
      %s19 = sphi 0, %s17
      %s20 = sphi 0, %s18
      %s21 = sphi 0, %s19
      %s31 = sphi 0, %s33
      %s34 = sphi 0, %s31
      %s35 = sphi 0, %s34
      %s51 = sphi 0, %s35
      %s57 = sphi 0, %s59
      %s60 = sphi 0, %s57
      %s61 = sphi 0, %s60
      %s77 = sphi 0, %s61
      %s83 = sphi 0, %s85
      %s86 = sphi 0, %s83
      %s87 = sphi 0, %s86
      %s103 = sphi 0, %s87
      %s111 = sphi 0, %s113
      %s114 = sphi 0, %s111
      %s115 = sphi 0, %s114
      %s131 = sphi 0, %s115
    $region4: #{tpu_custom_call.1} parent=1 // loop_header_branch
      %12 = sbr.rel (%p10) target = $region8
    $region5: #{tpu_custom_call.1} parent=1 // loop_body
      %s14 = ssub.s32 %s9, 1
      %s15 = ssub.s32 %s9, 2
      %s22 = sadd.s32 1, %s17
      %p23 = scmp.ge.s32.totalorder %s22, 1
      %s24 = scalar_select %p23, 0, %s22
      %s25 = sadd.s32 1, %s16
      %s26 = scalar_select %p23, %s25, %s16
      %p27 = scmp.ge.s32.totalorder %s26, 174
      %s28 = scalar_select %p27, 0, %s26
      %s29 = ssub.s32 %s16, %s28
      %p30 = scmp.eq.s32.totalorder %s29, 0
      %s32 = sadd.s32 %s31, 1
      %s33 = scalar_select %p30, %s31, %s32
      %p36 = pneg %p30
      %p37 = scmp.eq.s32.totalorder %s9, 173
      %p38 = por %p36, %p37
      %p39 = scmp.ne.s32.totalorder %s31, %s34
      %p40 = scmp.eq.s32.totalorder %s9, 0
      %p41 = por %p39, %p40
      %p42 = scmp.ne.s32.totalorder %s31, %s34
      %p43 = scmp.eq.s32.totalorder %s14, 173
      %p44 = por %p42, %p43
      %p45 = scmp.ne.s32.totalorder %s34, %s35
      %p46 = scmp.eq.s32.totalorder %s14, 0
      %p47 = por %p45, %p46
      %p48 = scmp.ne.s32.totalorder %s34, %s35
      %p49 = scmp.eq.s32.totalorder %s15, 173
      %p50 = por %p48, %p49
      %p52 = scmp.ne.s32.totalorder %s35, %s51
      %p53 = scmp.eq.s32.totalorder %s15, 0
      %p54 = por %p52, %p53
      %s55 = ssub.s32 %s17, %s24
      %p56 = scmp.eq.s32.totalorder %s55, 0
      %s58 = sadd.s32 %s57, 1
      %s59 = scalar_select %p56, %s57, %s58
      %p62 = pneg %p56
      %p63 = scmp.eq.s32.totalorder %s9, 173
      %p64 = por %p62, %p63
      %p65 = scmp.ne.s32.totalorder %s57, %s60
      %p66 = scmp.eq.s32.totalorder %s9, 0
      %p67 = por %p65, %p66
      %p68 = scmp.ne.s32.totalorder %s57, %s60
      %p69 = scmp.eq.s32.totalorder %s14, 173
      %p70 = por %p68, %p69
      %p71 = scmp.ne.s32.totalorder %s60, %s61
      %p72 = scmp.eq.s32.totalorder %s14, 0
      %p73 = por %p71, %p72
      %p74 = scmp.ne.s32.totalorder %s60, %s61
      %p75 = scmp.eq.s32.totalorder %s15, 173
      %p76 = por %p74, %p75
      %p78 = scmp.ne.s32.totalorder %s61, %s77
      %p79 = scmp.eq.s32.totalorder %s15, 0
      %p80 = por %p78, %p79
      %s81 = ssub.s32 %s17, %s24
      %p82 = scmp.eq.s32.totalorder %s81, 0
      %s84 = sadd.s32 %s83, 1
      %s85 = scalar_select %p82, %s83, %s84
      %p88 = pneg %p82
      %p89 = scmp.eq.s32.totalorder %s9, 173
      %p90 = por %p88, %p89
      %p91 = scmp.ne.s32.totalorder %s83, %s86
      %p92 = scmp.eq.s32.totalorder %s9, 0
      %p93 = por %p91, %p92
      %p94 = scmp.ne.s32.totalorder %s83, %s86
      %p95 = scmp.eq.s32.totalorder %s14, 173
      %p96 = por %p94, %p95
      %p97 = scmp.ne.s32.totalorder %s86, %s87
      %p98 = scmp.eq.s32.totalorder %s14, 0
      %p99 = por %p97, %p98
      %p100 = scmp.ne.s32.totalorder %s86, %s87
      %p101 = scmp.eq.s32.totalorder %s15, 173
      %p102 = por %p100, %p101
      %p104 = scmp.ne.s32.totalorder %s87, %s103
      %p105 = scmp.eq.s32.totalorder %s15, 0
      %p106 = por %p104, %p105
      %s107 = ssub.s32 %s16, %s28
      %s108 = ssub.s32 %s17, %s24
      %s109 = sor.u32 %s107, %s108
      %p110 = scmp.eq.s32.totalorder %s109, 0
      %s112 = sadd.s32 %s111, 1
      %s113 = scalar_select %p110, %s111, %s112
      %p116 = pneg %p110
      %p117 = scmp.eq.s32.totalorder %s9, 173
      %p118 = por %p116, %p117
      %p119 = scmp.ne.s32.totalorder %s111, %s114
      %p120 = scmp.eq.s32.totalorder %s9, 0
      %p121 = por %p119, %p120
      %p122 = scmp.ne.s32.totalorder %s111, %s114
      %p123 = scmp.eq.s32.totalorder %s14, 173
      %p124 = por %p122, %p123
      %p125 = scmp.ne.s32.totalorder %s114, %s115
      %p126 = scmp.eq.s32.totalorder %s14, 0
      %p127 = por %p125, %p126
      %p128 = scmp.ne.s32.totalorder %s114, %s115
      %p129 = scmp.eq.s32.totalorder %s15, 173
      %p130 = por %p128, %p129
      %p132 = scmp.ne.s32.totalorder %s115, %s131
      %p133 = scmp.eq.s32.totalorder %s15, 0
      %p134 = por %p132, %p133
      %p135 = scmp.le.s32.totalorder 1, %s9
      %p136 = scmp.lt.s32.totalorder %s9, 175
      %p137 = pnand %p135, %p136
      %p138 = pneg %p137
      // Predicated region
      $region9: #{tpu_custom_call.1} parent=5 // pred_check
        _
      $region10: #{tpu_custom_call.1} parent=5 // pred_check_branch
        %140 = sbr.rel (%p137) target = $region12
      $region11: #{tpu_custom_call.1} parent=5 // pred_region
        %s141 = ssub.s32 %s9, 1
        // Predicated region
        $region13: #{tpu_custom_call.1} parent=11 // pred_check
          %p142 = pneg %p73
        $region14: #{tpu_custom_call.1} parent=11 // pred_check_branch
          %144 = sbr.rel (%p142) target = $region16
        $region15: #{tpu_custom_call.1} parent=11 // pred_region
          %p145 = scmp.lt.s32.totalorder %s19, 0
          %s146 = scalar_select %p145, %s19, 0
          %s147 = smul.addr %s146, 4
          %s148 = scalar_lea.vmem %s1, %s147
        $region16: #{tpu_custom_call.1} parent=11 // pred_fallthru
          _
        // Predicated region
        $region17: #{tpu_custom_call.1} parent=11 // pred_check
          %p149 = pneg %p99
        $region18: #{tpu_custom_call.1} parent=11 // pred_check_branch
          %151 = sbr.rel (%p149) target = $region20
        $region19: #{tpu_custom_call.1} parent=11 // pred_region
          %p152 = scmp.lt.s32.totalorder %s19, 0
          %s153 = scalar_select %p152, %s19, 0
          %s154 = scalar_lea.vmem %s2, %s153
        $region20: #{tpu_custom_call.1} parent=11 // pred_fallthru
          _
      $region12: #{tpu_custom_call.1} parent=5 // pred_fallthru
        _
      %p155 = scmp.lt.s32.totalorder %s9, 174
      // Predicated region
      $region21: #{tpu_custom_call.1} parent=5 // pred_check
        %p156 = pneg %p155
      $region22: #{tpu_custom_call.1} parent=5 // pred_check_branch
        %158 = sbr.rel (%p156) target = $region24
      $region23: #{tpu_custom_call.1} parent=5 // pred_region
        // Predicated region
        $region25: #{tpu_custom_call.1} parent=23 // pred_check
          %p159 = pneg %p41
        $region26: #{tpu_custom_call.1} parent=23 // pred_check_branch
          %161 = sbr.rel (%p159) target = $region28
        $region27: #{tpu_custom_call.1} parent=23 // pred_region
          %s162 = smul.u32 32, %s16
          %s163 = ssub.s32 5551, %s162
          %p164 = scmp.lt.s32.totalorder %s163, 32
          %s165 = scalar_select %p164, %s163, 32
          %s166 = smul.u32 64, %s165
          %p167 = scmp.lt.s32.totalorder %s162, 5550
          %s168 = scalar_select %p167, %s162, 5550
          %s169 = smul.addr %s168, 4
          %s170 = scalar_lea.vmem %s0, %s169
          %s171 = smul.u32 32, %s16
          %s172 = ssub.s32 5551, %s171
          %p173 = scmp.lt.s32.totalorder %s172, 32
          %s174 = scalar_select %p173, %s172, 32
          %s175 = smul.u32 64, %s174
        $region28: #{tpu_custom_call.1} parent=23 // pred_fallthru
          _
      $region24: #{tpu_custom_call.1} parent=5 // pred_fallthru
        _
      %p176 = scmp.le.s32.totalorder 1, %s9
      %p177 = scmp.lt.s32.totalorder %s9, 175
      %p178 = pnand %p176, %p177
      %p179 = pneg %p178
      // Predicated region
      $region29: #{tpu_custom_call.1} parent=5 // pred_check
        _
      $region30: #{tpu_custom_call.1} parent=5 // pred_check_branch
        %181 = sbr.rel (%p178) target = $region32
      $region31: #{tpu_custom_call.1} parent=5 // pred_region
        %s182 = ssub.s32 %s9, 1
        %s183 = smul.u32 32, %s18
        %s184 = ssub.s32 5551, %s183
        %p185 = scmp.lt.s32.totalorder %s184, 32
        %s186 = scalar_select %p185, %s184, 32
        %s187 = smul.u32 64, %s186
        %p188 = scmp.lt.s32.totalorder %s183, 5550
        %s189 = scalar_select %p188, %s183, 5550
        %s190 = smul.addr %s189, 4
        %s191 = scalar_lea.vmem %s0, %s190
        %p192 = pneg %p47
        %p193 = pneg %p44
        %p194 = scmp.lt.s32.totalorder %s19, 0
        %s195 = scalar_select %p194, %s19, 0
        %s196 = smul.addr %s195, 4
        %s197 = scalar_lea.vmem %s1, %s196
        %p198 = pneg %p73
        %p199 = pneg %p70
        %p200 = scmp.lt.s32.totalorder %s19, 0
        %s201 = scalar_select %p200, %s19, 0
        %s202 = scalar_lea.vmem %s2, %s201
        %p203 = pneg %p99
        %p204 = pneg %p96
        %p205 = pneg %p127
        %p206 = pneg %p124
        %s207 = sand.u32 %s114, 1
        %s208 = sand.u32 %s114, 1
        %s209 = smul.addr %s208, 128
        %s210 = scalar_lea.vmem [#allocation2], %s209
        %s211 = smul.u32 32, %s18
        %s212 = ssub.s32 5551, %s211
        %p213 = scmp.lt.s32.totalorder %s212, 32
        %s214 = scalar_select %p213, %s212, 32
        %s215 = smul.u32 64, %s214
        %p216 = scmp.lt.s32.totalorder %s211, 5550
        %s217 = scalar_select %p216, %s211, 5550
        %s218 = smul.addr %s217, 4
        %s219 = scalar_lea.vmem %s0, %s218
        %s220 = smul.u32 32, %s18
        %s221 = ssub.s32 5551, %s220
        %p222 = scmp.lt.s32.totalorder %s221, 32
        %s223 = scalar_select %p222, %s221, 32
        %s224 = smul.u32 64, %s223
        %p225 = scmp.lt.s32.totalorder %s19, 0
        %s226 = scalar_select %p225, %s19, 0
        %s227 = smul.addr %s226, 4
        %s228 = scalar_lea.vmem %s1, %s227
        %p229 = scmp.lt.s32.totalorder %s19, 0
        %s230 = scalar_select %p229, %s19, 0
        %s231 = scalar_lea.vmem %s2, %s230
        %s232 = smul.u32 32, %s18
        %s233 = ssub.s32 5551, %s232
        %p234 = scmp.lt.s32.totalorder %s233, 32
        %s235 = scalar_select %p234, %s233, 32
        %s236 = smul.u32 64, %s235
        %v238 = vld [vmem:[%s219] sm:$0xf]
        %v239 = vld [vmem:[%s219 + $0x4] sm:$0xf]
        %v240 = vld [vmem:[%s219 + $0x8] sm:$0xf]
        %v241 = vld [vmem:[%s219 + $0xc] sm:$0xf]
        %v242 = vld [vmem:[%s219 + $0x10] sm:$0xf]
        %v243 = vld [vmem:[%s219 + $0x14] sm:$0xf]
        %v244 = vld [vmem:[%s219 + $0x18] sm:$0xf]
        %v245 = vld [vmem:[%s219 + $0x1c] sm:$0xf]
        %v246 = vld [vmem:[%s219 + $0x20] sm:$0xf]
        %v247 = vld [vmem:[%s219 + $0x24] sm:$0xf]
        %v248 = vld [vmem:[%s219 + $0x28] sm:$0xf]
        %v249 = vld [vmem:[%s219 + $0x2c] sm:$0xf]
        %v250 = vld [vmem:[%s219 + $0x30] sm:$0xf]
        %v251 = vld [vmem:[%s219 + $0x34] sm:$0xf]
        %v252 = vld [vmem:[%s219 + $0x38] sm:$0xf]
        %v253 = vld [vmem:[%s219 + $0x3c] sm:$0xf]
        %v254 = vld [vmem:[%s219 + $0x40] sm:$0xf]
        %v255 = vld [vmem:[%s219 + $0x44] sm:$0xf]
        %v256 = vld [vmem:[%s219 + $0x48] sm:$0xf]
        %v257 = vld [vmem:[%s219 + $0x4c] sm:$0xf]
        %v258 = vld [vmem:[%s219 + $0x50] sm:$0xf]
        %v259 = vld [vmem:[%s219 + $0x54] sm:$0xf]
        %v260 = vld [vmem:[%s219 + $0x58] sm:$0xf]
        %v261 = vld [vmem:[%s219 + $0x5c] sm:$0xf]
        %v262 = vld [vmem:[%s219 + $0x60] sm:$0xf]
        %v263 = vld [vmem:[%s219 + $0x64] sm:$0xf]
        %v264 = vld [vmem:[%s219 + $0x68] sm:$0xf]
        %v265 = vld [vmem:[%s219 + $0x6c] sm:$0xf]
        %v266 = vld [vmem:[%s219 + $0x70] sm:$0xf]
        %v267 = vld [vmem:[%s219 + $0x74] sm:$0xf]
        %v268 = vld [vmem:[%s219 + $0x78] sm:$0xf]
        %v269 = vld [vmem:[%s219 + $0x7c] sm:$0xf]
        %v270 = vld [vmem:[%s228] sm:$0xf]
        %v271 = vld [vmem:[%s228 + $0x4] sm:$0xf]
        %v272 = vld [vmem:[%s228 + $0x8] sm:$0xf]
        %v273 = vld [vmem:[%s228 + $0xc] sm:$0xf]
        %v274 = vld [vmem:[%s231] sm:$0x1]
        %v276 = vlaneseq
        %v277 = vshrl.u32 %v276, 7
        %v278 = vsub.s32 0, %v277
        %v279 = vrot.slane %v274, %v278
        %v313 = vunpack.c.l.b16 %v238
        %v314 = vunpack.c.l.b16 %v239
        %v315 = vunpack.c.l.b16 %v240
        %v316 = vunpack.c.l.b16 %v241
        %v317 = vunpack.c.l.b16 %v242
        %v318 = vunpack.c.l.b16 %v243
        %v319 = vunpack.c.l.b16 %v244
        %v320 = vunpack.c.l.b16 %v245
        %v321 = vunpack.c.l.b16 %v246
        %v322 = vunpack.c.l.b16 %v247
        %v323 = vunpack.c.l.b16 %v248
        %v324 = vunpack.c.l.b16 %v249
        %v325 = vunpack.c.l.b16 %v250
        %v326 = vunpack.c.l.b16 %v251
        %v327 = vunpack.c.l.b16 %v252
        %v328 = vunpack.c.l.b16 %v253
        %v329 = vunpack.c.l.b16 %v254
        %v330 = vunpack.c.l.b16 %v255
        %v331 = vunpack.c.l.b16 %v256
        %v332 = vunpack.c.l.b16 %v257
        %v333 = vunpack.c.l.b16 %v258
        %v334 = vunpack.c.l.b16 %v259
        %v335 = vunpack.c.l.b16 %v260
        %v336 = vunpack.c.l.b16 %v261
        %v337 = vunpack.c.l.b16 %v262
        %v338 = vunpack.c.l.b16 %v263
        %v339 = vunpack.c.l.b16 %v264
        %v340 = vunpack.c.l.b16 %v265
        %v341 = vunpack.c.l.b16 %v266
        %v342 = vunpack.c.l.b16 %v267
        %v343 = vunpack.c.l.b16 %v268
        %v344 = vunpack.c.l.b16 %v269
        %v345 = vpack.c.b16 %v314, %v313
        %v346 = vpack.c.b16 %v316, %v315
        %v347 = vpack.c.b16 %v318, %v317
        %v348 = vpack.c.b16 %v320, %v319
        %v349 = vpack.c.b16 %v322, %v321
        %v350 = vpack.c.b16 %v324, %v323
        %v351 = vpack.c.b16 %v326, %v325
        %v352 = vpack.c.b16 %v328, %v327
        %v353 = vpack.c.b16 %v330, %v329
        %v354 = vpack.c.b16 %v332, %v331
        %v355 = vpack.c.b16 %v334, %v333
        %v356 = vpack.c.b16 %v336, %v335
        %v357 = vpack.c.b16 %v338, %v337
        %v358 = vpack.c.b16 %v340, %v339
        %v359 = vpack.c.b16 %v342, %v341
        %v360 = vpack.c.b16 %v344, %v343
        %v365 = vunpack.c.l.b16 %v270
        %v366 = vunpack.c.l.b16 %v271
        %v367 = vunpack.c.l.b16 %v272
        %v368 = vunpack.c.l.b16 %v273
        %v369 = vpack.c.b16 %v366, %v365
        %v370 = vpack.c.b16 %v368, %v367
        %vm373 = vcmask 261120
        %v375 = vsel %vm373, %v345, 0
        %v378 = vsel %vm373, %v346, 0
        %v381 = vsel %vm373, %v347, 0
        %v384 = vsel %vm373, %v348, 0
        %v387 = vsel %vm373, %v349, 0
        %v390 = vsel %vm373, %v350, 0
        %v393 = vsel %vm373, %v351, 0
        %v396 = vsel %vm373, %v352, 0
        %v399 = vsel %vm373, %v353, 0
        %v402 = vsel %vm373, %v354, 0
        %v405 = vsel %vm373, %v355, 0
        %v408 = vsel %vm373, %v356, 0
        %v411 = vsel %vm373, %v357, 0
        %v414 = vsel %vm373, %v358, 0
        %v417 = vsel %vm373, %v359, 0
        %v420 = vsel %vm373, %v360, 0
        %422 = vmatprep.subr.bf16.mxu0 0
        %423 = vmatpush1.bf16.msra.mxu0 0
        %424 = vmatprep.subr.bf16.mxu0 0
        %425 = vmatpush1.bf16.msra.mxu0 0
        %426 = vmatprep.subr.bf16.mxu0 0
        %427 = vmatpush1.bf16.msra.mxu0 0
        %428 = vmatprep.subr.bf16.mxu0 0
        %429 = vmatpush1.bf16.msra.mxu0 0
        %430 = vmatprep.subr.bf16.mxu0 0
        %431 = vmatpush1.bf16.msra.mxu0 0
        %432 = vmatprep.subr.bf16.mxu0 0
        %433 = vmatpush1.bf16.msra.mxu0 0
        %434 = vmatprep.subr.bf16.mxu0 0
        %435 = vmatpush1.bf16.msra.mxu0 %v370
        %436 = vmatprep.subr.bf16.mxu0 0
        %437 = vmatpush1.bf16.msra.mxu0 %v369
        %438 = vmatprep.subr.bf16.mxu0 0
        %439 = vmatpush2.bf16.msra.mxu0 0
        %440 = vmatprep.subr.bf16.mxu0 0
        %441 = vmatpush2.bf16.msra.mxu0 0
        %442 = vmatprep.subr.bf16.mxu0 0
        %443 = vmatpush2.bf16.msra.mxu0 0
        %444 = vmatprep.subr.bf16.mxu0 0
        %445 = vmatpush2.bf16.msra.mxu0 0
        %446 = vmatprep.subr.bf16.mxu0 0
        %447 = vmatpush2.bf16.msra.mxu0 0
        %448 = vmatprep.subr.bf16.mxu0 0
        %449 = vmatpush2.bf16.msra.mxu0 0
        %450 = vmatprep.subr.bf16.mxu0 0
        %451 = vmatpush2.bf16.msra.mxu0 0
        %452 = vmatprep.subr.bf16.mxu0 0
        %453 = vmatpush2.bf16.msra.mxu0 0
        %454 = vmatprep.mubr.bf16.mxu0 0
        %455 = vmatmul.mubr.bf16.gmra.mxu0 %v375
        %v456 = vpop.f32.mrf.mxu0
        %v457 = vadd.f32 %v279, %v456
        %v458 = vpop.f32.mrf.mxu0
        %v459 = vpop.f32.mrf.mxu0
        %v460 = vadd.f32 %v279, %v459
        %v461 = vpop.f32.mrf.mxu0
        %462 = vmatprep.mubr.bf16.mxu0 0
        %463 = vmatmul.mubr.bf16.gmra.mxu0 %v378
        %v464 = vpop.f32.mrf.mxu0
        %v465 = vadd.f32 %v279, %v464
        %v466 = vpop.f32.mrf.mxu0
        %v467 = vpop.f32.mrf.mxu0
        %v468 = vadd.f32 %v279, %v467
        %v469 = vpop.f32.mrf.mxu0
        %470 = vmatprep.mubr.bf16.mxu0 0
        %471 = vmatmul.mubr.bf16.gmra.mxu0 %v381
        %v472 = vpop.f32.mrf.mxu0
        %v473 = vadd.f32 %v279, %v472
        %v474 = vpop.f32.mrf.mxu0
        %v475 = vpop.f32.mrf.mxu0
        %v476 = vadd.f32 %v279, %v475
        %v477 = vpop.f32.mrf.mxu0
        %478 = vmatprep.mubr.bf16.mxu0 0
        %479 = vmatmul.mubr.bf16.gmra.mxu0 %v384
        %v480 = vpop.f32.mrf.mxu0
        %v481 = vadd.f32 %v279, %v480
        %v482 = vpop.f32.mrf.mxu0
        %v483 = vpop.f32.mrf.mxu0
        %v484 = vadd.f32 %v279, %v483
        %v485 = vpop.f32.mrf.mxu0
        %486 = vmatprep.mubr.bf16.mxu0 0
        %487 = vmatmul.mubr.bf16.gmra.mxu0 %v387
        %v488 = vpop.f32.mrf.mxu0
        %v489 = vadd.f32 %v279, %v488
        %v490 = vpop.f32.mrf.mxu0
        %v491 = vpop.f32.mrf.mxu0
        %v492 = vadd.f32 %v279, %v491
        %v493 = vpop.f32.mrf.mxu0
        %494 = vmatprep.mubr.bf16.mxu0 0
        %495 = vmatmul.mubr.bf16.gmra.mxu0 %v390
        %v496 = vpop.f32.mrf.mxu0
        %v497 = vadd.f32 %v279, %v496
        %v498 = vpop.f32.mrf.mxu0
        %v499 = vpop.f32.mrf.mxu0
        %v500 = vadd.f32 %v279, %v499
        %v501 = vpop.f32.mrf.mxu0
        %502 = vmatprep.mubr.bf16.mxu0 0
        %503 = vmatmul.mubr.bf16.gmra.mxu0 %v393
        %v504 = vpop.f32.mrf.mxu0
        %v505 = vadd.f32 %v279, %v504
        %v506 = vpop.f32.mrf.mxu0
        %v507 = vpop.f32.mrf.mxu0
        %v508 = vadd.f32 %v279, %v507
        %v509 = vpop.f32.mrf.mxu0
        %510 = vmatprep.mubr.bf16.mxu0 0
        %511 = vmatmul.mubr.bf16.gmra.mxu0 %v396
        %v512 = vpop.f32.mrf.mxu0
        %v513 = vadd.f32 %v279, %v512
        %v514 = vpop.f32.mrf.mxu0
        %v515 = vpop.f32.mrf.mxu0
        %v516 = vadd.f32 %v279, %v515
        %v517 = vpop.f32.mrf.mxu0
        %518 = vmatprep.mubr.bf16.mxu0 0
        %519 = vmatmul.mubr.bf16.gmra.mxu0 %v399
        %v520 = vpop.f32.mrf.mxu0
        %v521 = vadd.f32 %v279, %v520
        %v522 = vpop.f32.mrf.mxu0
        %v523 = vpop.f32.mrf.mxu0
        %v524 = vadd.f32 %v279, %v523
        %v525 = vpop.f32.mrf.mxu0
        %526 = vmatprep.mubr.bf16.mxu0 0
        %527 = vmatmul.mubr.bf16.gmra.mxu0 %v402
        %v528 = vpop.f32.mrf.mxu0
        %v529 = vadd.f32 %v279, %v528
        %v530 = vpop.f32.mrf.mxu0
        %v531 = vpop.f32.mrf.mxu0
        %v532 = vadd.f32 %v279, %v531
        %v533 = vpop.f32.mrf.mxu0
        %534 = vmatprep.mubr.bf16.mxu0 0
        %535 = vmatmul.mubr.bf16.gmra.mxu0 %v405
        %v536 = vpop.f32.mrf.mxu0
        %v537 = vadd.f32 %v279, %v536
        %v538 = vpop.f32.mrf.mxu0
        %v539 = vpop.f32.mrf.mxu0
        %v540 = vadd.f32 %v279, %v539
        %v541 = vpop.f32.mrf.mxu0
        %542 = vmatprep.mubr.bf16.mxu0 0
        %543 = vmatmul.mubr.bf16.gmra.mxu0 %v408
        %v544 = vpop.f32.mrf.mxu0
        %v545 = vadd.f32 %v279, %v544
        %v546 = vpop.f32.mrf.mxu0
        %v547 = vpop.f32.mrf.mxu0
        %v548 = vadd.f32 %v279, %v547
        %v549 = vpop.f32.mrf.mxu0
        %550 = vmatprep.mubr.bf16.mxu0 0
        %551 = vmatmul.mubr.bf16.gmra.mxu0 %v411
        %v552 = vpop.f32.mrf.mxu0
        %v553 = vadd.f32 %v279, %v552
        %v554 = vpop.f32.mrf.mxu0
        %v555 = vpop.f32.mrf.mxu0
        %v556 = vadd.f32 %v279, %v555
        %v557 = vpop.f32.mrf.mxu0
        %558 = vmatprep.mubr.bf16.mxu0 0
        %559 = vmatmul.mubr.bf16.gmra.mxu0 %v414
        %v560 = vpop.f32.mrf.mxu0
        %v561 = vadd.f32 %v279, %v560
        %v562 = vpop.f32.mrf.mxu0
        %v563 = vpop.f32.mrf.mxu0
        %v564 = vadd.f32 %v279, %v563
        %v565 = vpop.f32.mrf.mxu0
        %566 = vmatprep.mubr.bf16.mxu0 0
        %567 = vmatmul.mubr.bf16.gmra.mxu0 %v417
        %v568 = vpop.f32.mrf.mxu0
        %v569 = vadd.f32 %v279, %v568
        %v570 = vpop.f32.mrf.mxu0
        %v571 = vpop.f32.mrf.mxu0
        %v572 = vadd.f32 %v279, %v571
        %v573 = vpop.f32.mrf.mxu0
        %574 = vmatprep.mubr.bf16.mxu0 0
        %575 = vmatmul.mubr.bf16.gmra.mxu0 %v420
        %v576 = vpop.f32.mrf.mxu0
        %v577 = vadd.f32 %v279, %v576
        %v578 = vpop.f32.mrf.mxu0
        %v579 = vpop.f32.mrf.mxu0
        %v580 = vadd.f32 %v279, %v579
        %v581 = vpop.f32.mrf.mxu0
        %582 = vdwg.mxu0
        %v583 = vmax.f32 %v457, 0.0
        %v584 = vmax.f32 %v460, 0.0
        %v585 = vmax.f32 %v465, 0.0
        %v586 = vmax.f32 %v468, 0.0
        %v587 = vmax.f32 %v473, 0.0
        %v588 = vmax.f32 %v476, 0.0
        %v589 = vmax.f32 %v481, 0.0
        %v590 = vmax.f32 %v484, 0.0
        %v591 = vmax.f32 %v489, 0.0
        %v592 = vmax.f32 %v492, 0.0
        %v593 = vmax.f32 %v497, 0.0
        %v594 = vmax.f32 %v500, 0.0
        %v595 = vmax.f32 %v505, 0.0
        %v596 = vmax.f32 %v508, 0.0
        %v597 = vmax.f32 %v513, 0.0
        %v598 = vmax.f32 %v516, 0.0
        %v599 = vmax.f32 %v521, 0.0
        %v600 = vmax.f32 %v524, 0.0
        %v601 = vmax.f32 %v529, 0.0
        %v602 = vmax.f32 %v532, 0.0
        %v603 = vmax.f32 %v537, 0.0
        %v604 = vmax.f32 %v540, 0.0
        %v605 = vmax.f32 %v545, 0.0
        %v606 = vmax.f32 %v548, 0.0
        %v607 = vmax.f32 %v553, 0.0
        %v608 = vmax.f32 %v556, 0.0
        %v609 = vmax.f32 %v561, 0.0
        %v610 = vmax.f32 %v564, 0.0
        %v611 = vmax.f32 %v569, 0.0
        %v612 = vmax.f32 %v572, 0.0
        %v613 = vmax.f32 %v577, 0.0
        %v614 = vmax.f32 %v580, 0.0
        %v615 = vpack.c.bf16 %v584, %v583
        %v616 = vpack.c.bf16 %v586, %v585
        %v617 = vpack.c.bf16 %v588, %v587
        %v618 = vpack.c.bf16 %v590, %v589
        %v619 = vpack.c.bf16 %v592, %v591
        %v620 = vpack.c.bf16 %v594, %v593
        %v621 = vpack.c.bf16 %v596, %v595
        %v622 = vpack.c.bf16 %v598, %v597
        %v623 = vpack.c.bf16 %v600, %v599
        %v624 = vpack.c.bf16 %v602, %v601
        %v625 = vpack.c.bf16 %v604, %v603
        %v626 = vpack.c.bf16 %v606, %v605
        %v627 = vpack.c.bf16 %v608, %v607
        %v628 = vpack.c.bf16 %v610, %v609
        %v629 = vpack.c.bf16 %v612, %v611
        %v630 = vpack.c.bf16 %v614, %v613
        %v647 = vunpack.c.l.b16 %v615
        %v648 = vunpack.c.h.b16 %v615
        %v649 = vunpack.c.l.b16 %v616
        %v650 = vunpack.c.h.b16 %v616
        %v651 = vunpack.c.l.b16 %v617
        %v652 = vunpack.c.h.b16 %v617
        %v653 = vunpack.c.l.b16 %v618
        %v654 = vunpack.c.h.b16 %v618
        %v655 = vunpack.c.l.b16 %v619
        %v656 = vunpack.c.h.b16 %v619
        %v657 = vunpack.c.l.b16 %v620
        %v658 = vunpack.c.h.b16 %v620
        %v659 = vunpack.c.l.b16 %v621
        %v660 = vunpack.c.h.b16 %v621
        %v661 = vunpack.c.l.b16 %v622
        %v662 = vunpack.c.h.b16 %v622
        %v663 = vunpack.c.l.b16 %v623
        %v664 = vunpack.c.h.b16 %v623
        %v665 = vunpack.c.l.b16 %v624
        %v666 = vunpack.c.h.b16 %v624
        %v667 = vunpack.c.l.b16 %v625
        %v668 = vunpack.c.h.b16 %v625
        %v669 = vunpack.c.l.b16 %v626
        %v670 = vunpack.c.h.b16 %v626
        %v671 = vunpack.c.l.b16 %v627
        %v672 = vunpack.c.h.b16 %v627
        %v673 = vunpack.c.l.b16 %v628
        %v674 = vunpack.c.h.b16 %v628
        %v675 = vunpack.c.l.b16 %v629
        %v676 = vunpack.c.h.b16 %v629
        %v677 = vunpack.c.l.b16 %v630
        %v678 = vunpack.c.h.b16 %v630
        %v679 = vpack.c.b16 %v647, %v647
        %v680 = vpack.c.b16 %v648, %v648
        %v681 = vpack.c.b16 %v649, %v649
        %v682 = vpack.c.b16 %v650, %v650
        %v683 = vpack.c.b16 %v651, %v651
        %v684 = vpack.c.b16 %v652, %v652
        %v685 = vpack.c.b16 %v653, %v653
        %v686 = vpack.c.b16 %v654, %v654
        %v687 = vpack.c.b16 %v655, %v655
        %v688 = vpack.c.b16 %v656, %v656
        %v689 = vpack.c.b16 %v657, %v657
        %v690 = vpack.c.b16 %v658, %v658
        %v691 = vpack.c.b16 %v659, %v659
        %v692 = vpack.c.b16 %v660, %v660
        %v693 = vpack.c.b16 %v661, %v661
        %v694 = vpack.c.b16 %v662, %v662
        %v695 = vpack.c.b16 %v663, %v663
        %v696 = vpack.c.b16 %v664, %v664
        %v697 = vpack.c.b16 %v665, %v665
        %v698 = vpack.c.b16 %v666, %v666
        %v699 = vpack.c.b16 %v667, %v667
        %v700 = vpack.c.b16 %v668, %v668
        %v701 = vpack.c.b16 %v669, %v669
        %v702 = vpack.c.b16 %v670, %v670
        %v703 = vpack.c.b16 %v671, %v671
        %v704 = vpack.c.b16 %v672, %v672
        %v705 = vpack.c.b16 %v673, %v673
        %v706 = vpack.c.b16 %v674, %v674
        %v707 = vpack.c.b16 %v675, %v675
        %v708 = vpack.c.b16 %v676, %v676
        %v709 = vpack.c.b16 %v677, %v677
        %v710 = vpack.c.b16 %v678, %v678
        %vm743 = vcmask 257024
        %744 = vst.msk [vmem:[%s210] sm:$0xf] %vm743, %v679
        %745 = vst.msk [vmem:[%s210 + $0x4] sm:$0xf] %vm743, %v680
        %746 = vst.msk [vmem:[%s210 + $0x8] sm:$0xf] %vm743, %v681
        %747 = vst.msk [vmem:[%s210 + $0xc] sm:$0xf] %vm743, %v682
        %748 = vst.msk [vmem:[%s210 + $0x10] sm:$0xf] %vm743, %v683
        %749 = vst.msk [vmem:[%s210 + $0x14] sm:$0xf] %vm743, %v684
        %750 = vst.msk [vmem:[%s210 + $0x18] sm:$0xf] %vm743, %v685
        %751 = vst.msk [vmem:[%s210 + $0x1c] sm:$0xf] %vm743, %v686
        %752 = vst.msk [vmem:[%s210 + $0x20] sm:$0xf] %vm743, %v687
        %753 = vst.msk [vmem:[%s210 + $0x24] sm:$0xf] %vm743, %v688
        %754 = vst.msk [vmem:[%s210 + $0x28] sm:$0xf] %vm743, %v689
        %755 = vst.msk [vmem:[%s210 + $0x2c] sm:$0xf] %vm743, %v690
        %756 = vst.msk [vmem:[%s210 + $0x30] sm:$0xf] %vm743, %v691
        %757 = vst.msk [vmem:[%s210 + $0x34] sm:$0xf] %vm743, %v692
        %758 = vst.msk [vmem:[%s210 + $0x38] sm:$0xf] %vm743, %v693
        %759 = vst.msk [vmem:[%s210 + $0x3c] sm:$0xf] %vm743, %v694
        %760 = vst.msk [vmem:[%s210 + $0x40] sm:$0xf] %vm743, %v695
        %761 = vst.msk [vmem:[%s210 + $0x44] sm:$0xf] %vm743, %v696
        %762 = vst.msk [vmem:[%s210 + $0x48] sm:$0xf] %vm743, %v697
        %763 = vst.msk [vmem:[%s210 + $0x4c] sm:$0xf] %vm743, %v698
        %764 = vst.msk [vmem:[%s210 + $0x50] sm:$0xf] %vm743, %v699
        %765 = vst.msk [vmem:[%s210 + $0x54] sm:$0xf] %vm743, %v700
        %766 = vst.msk [vmem:[%s210 + $0x58] sm:$0xf] %vm743, %v701
        %767 = vst.msk [vmem:[%s210 + $0x5c] sm:$0xf] %vm743, %v702
        %768 = vst.msk [vmem:[%s210 + $0x60] sm:$0xf] %vm743, %v703
        %769 = vst.msk [vmem:[%s210 + $0x64] sm:$0xf] %vm743, %v704
        %770 = vst.msk [vmem:[%s210 + $0x68] sm:$0xf] %vm743, %v705
        %771 = vst.msk [vmem:[%s210 + $0x6c] sm:$0xf] %vm743, %v706
        %772 = vst.msk [vmem:[%s210 + $0x70] sm:$0xf] %vm743, %v707
        %773 = vst.msk [vmem:[%s210 + $0x74] sm:$0xf] %vm743, %v708
        %774 = vst.msk [vmem:[%s210 + $0x78] sm:$0xf] %vm743, %v709
        %775 = vst.msk [vmem:[%s210 + $0x7c] sm:$0xf] %vm743, %v710
        %s776 = sand.u32 %s114, 1
        %s777 = sand.u32 %s114, 1
        %s778 = smul.addr %s777, 128
        %s779 = scalar_lea.vmem [#allocation2], %s778
        // Predicated region
        $region33: #{tpu_custom_call.1} parent=31 // pred_check
          %p780 = pneg %p124
        $region34: #{tpu_custom_call.1} parent=31 // pred_check_branch
          %782 = sbr.rel (%p780) target = $region36
        $region35: #{tpu_custom_call.1} parent=31 // pred_region
          %s783 = smul.u32 32, %s18
          %s784 = ssub.s32 5551, %s783
          %p785 = scmp.lt.s32.totalorder %s784, 32
          %s786 = scalar_select %p785, %s784, 32
          %s787 = smul.u32 64, %s786
          %p788 = scmp.ne.s32.totalorder 0, %s787
          %s789 = sadd.s32 %s19, %s783
          %s790 = smul.addr %s789, 4
          %s791 = scalar_lea.vmem %s3, %s790
          // Predicated region
          $region37: #{tpu_custom_call.1} parent=35 // pred_check
            %p792 = pneg %p788
          $region38: #{tpu_custom_call.1} parent=35 // pred_check_branch
            %794 = sbr.rel (%p792) target = $region40
          $region39: #{tpu_custom_call.1} parent=35 // pred_region
            // Predicated region
            $region41: #{tpu_custom_call.1} parent=39 // pred_check
              _
            $region42: #{tpu_custom_call.1} parent=39 // pred_check_branch
              %796 = sbr.rel target = $region44
            $region43: #{tpu_custom_call.1} parent=39 // pred_region
              // Predicated region
              $region63: #{tpu_custom_call.1} parent=43 // pred_check
                _
              $region64: #{tpu_custom_call.1} parent=43 // pred_check_branch
                %908 = sbr.rel (0) target = $region66
              $region65: #{tpu_custom_call.1} parent=43 // pred_region
                %s910 = ssub.s32 16, 1
                %s911 = sshrl.u32 %s786, 5
                // While loop
                $region67: #{tpu_custom_call.1} parent=65 // loop_pre_header
                  _
                $region68: #{tpu_custom_call.1} parent=65 // loop_header
                  %s913 = sphi 0, %s915
                  %p914 = scmp.ge.s32.totalorder %s913, %s911
                  %s918 = sphi 0, %s987
                  %s919 = sphi %s779, %s990
                  %s920 = sphi %s791, %s991
                $region69: #{tpu_custom_call.1} parent=65 // loop_header_branch
                  %917 = sbr.rel (%p914) target = $region73
                $region70: #{tpu_custom_call.1} parent=65 // loop_body
                  %v921 = vld [vmem:[%s919] sm:%s910]
                  %922 = vst [vmem:[%s920] sm:%s910] %v921
                  %v923 = vld [vmem:[%s919 + $0x4] sm:%s910]
                  %924 = vst [vmem:[%s920 + $0x4] sm:%s910] %v923
                  %v925 = vld [vmem:[%s919 + $0x8] sm:%s910]
                  %926 = vst [vmem:[%s920 + $0x8] sm:%s910] %v925
                  %v927 = vld [vmem:[%s919 + $0xc] sm:%s910]
                  %928 = vst [vmem:[%s920 + $0xc] sm:%s910] %v927
                  %v929 = vld [vmem:[%s919 + $0x10] sm:%s910]
                  %930 = vst [vmem:[%s920 + $0x10] sm:%s910] %v929
                  %v931 = vld [vmem:[%s919 + $0x14] sm:%s910]
                  %932 = vst [vmem:[%s920 + $0x14] sm:%s910] %v931
                  %v933 = vld [vmem:[%s919 + $0x18] sm:%s910]
                  %934 = vst [vmem:[%s920 + $0x18] sm:%s910] %v933
                  %v935 = vld [vmem:[%s919 + $0x1c] sm:%s910]
                  %936 = vst [vmem:[%s920 + $0x1c] sm:%s910] %v935
                  %v937 = vld [vmem:[%s919 + $0x20] sm:%s910]
                  %938 = vst [vmem:[%s920 + $0x20] sm:%s910] %v937
                  %v939 = vld [vmem:[%s919 + $0x24] sm:%s910]
                  %940 = vst [vmem:[%s920 + $0x24] sm:%s910] %v939
                  %v941 = vld [vmem:[%s919 + $0x28] sm:%s910]
                  %942 = vst [vmem:[%s920 + $0x28] sm:%s910] %v941
                  %v943 = vld [vmem:[%s919 + $0x2c] sm:%s910]
                  %944 = vst [vmem:[%s920 + $0x2c] sm:%s910] %v943
                  %v945 = vld [vmem:[%s919 + $0x30] sm:%s910]
                  %946 = vst [vmem:[%s920 + $0x30] sm:%s910] %v945
                  %v947 = vld [vmem:[%s919 + $0x34] sm:%s910]
                  %948 = vst [vmem:[%s920 + $0x34] sm:%s910] %v947
                  %v949 = vld [vmem:[%s919 + $0x38] sm:%s910]
                  %950 = vst [vmem:[%s920 + $0x38] sm:%s910] %v949
                  %v951 = vld [vmem:[%s919 + $0x3c] sm:%s910]
                  %952 = vst [vmem:[%s920 + $0x3c] sm:%s910] %v951
                  %v953 = vld [vmem:[%s919 + $0x40] sm:%s910]
                  %954 = vst [vmem:[%s920 + $0x40] sm:%s910] %v953
                  %v955 = vld [vmem:[%s919 + $0x44] sm:%s910]
                  %956 = vst [vmem:[%s920 + $0x44] sm:%s910] %v955
                  %v957 = vld [vmem:[%s919 + $0x48] sm:%s910]
                  %958 = vst [vmem:[%s920 + $0x48] sm:%s910] %v957
                  %v959 = vld [vmem:[%s919 + $0x4c] sm:%s910]
                  %960 = vst [vmem:[%s920 + $0x4c] sm:%s910] %v959
                  %v961 = vld [vmem:[%s919 + $0x50] sm:%s910]
                  %962 = vst [vmem:[%s920 + $0x50] sm:%s910] %v961
                  %v963 = vld [vmem:[%s919 + $0x54] sm:%s910]
                  %964 = vst [vmem:[%s920 + $0x54] sm:%s910] %v963
                  %v965 = vld [vmem:[%s919 + $0x58] sm:%s910]
                  %966 = vst [vmem:[%s920 + $0x58] sm:%s910] %v965
                  %v967 = vld [vmem:[%s919 + $0x5c] sm:%s910]
                  %968 = vst [vmem:[%s920 + $0x5c] sm:%s910] %v967
                  %v969 = vld [vmem:[%s919 + $0x60] sm:%s910]
                  %970 = vst [vmem:[%s920 + $0x60] sm:%s910] %v969
                  %v971 = vld [vmem:[%s919 + $0x64] sm:%s910]
                  %972 = vst [vmem:[%s920 + $0x64] sm:%s910] %v971
                  %v973 = vld [vmem:[%s919 + $0x68] sm:%s910]
                  %974 = vst [vmem:[%s920 + $0x68] sm:%s910] %v973
                  %v975 = vld [vmem:[%s919 + $0x6c] sm:%s910]
                  %976 = vst [vmem:[%s920 + $0x6c] sm:%s910] %v975
                  %v977 = vld [vmem:[%s919 + $0x70] sm:%s910]
                  %978 = vst [vmem:[%s920 + $0x70] sm:%s910] %v977
                  %v979 = vld [vmem:[%s919 + $0x74] sm:%s910]
                  %980 = vst [vmem:[%s920 + $0x74] sm:%s910] %v979
                  %v981 = vld [vmem:[%s919 + $0x78] sm:%s910]
                  %982 = vst [vmem:[%s920 + $0x78] sm:%s910] %v981
                  %v983 = vld [vmem:[%s919 + $0x7c] sm:%s910]
                  %984 = vst [vmem:[%s920 + $0x7c] sm:%s910] %v983
                  %s985 = sadd.s32 1, %s918
                  %p986 = scmp.ge.s32.totalorder %s985, %s911
                  %s987 = scalar_select %p986, 0, %s985
                  %s988 = smul.u32 %s987, 128
                  %s989 = smul.u32 %s987, 128
                  %s990 = scalar_lea.vmem %s779, %s988 [#allocation2]
                  %s991 = scalar_lea.vmem %s791, %s989
                $region71: #{tpu_custom_call.1} parent=65 // loop_footer
                  %s915 = sadd.s32 %s913, 1
                $region72: #{tpu_custom_call.1} parent=65 // loop_footer_branch
                  %912 = sbr.rel target = $region68
                $region73: #{tpu_custom_call.1} parent=65 // loop_exit
                  _
                %s992 = sshrl.u32 %s786, 5
                %s993 = sand.u32 %s786, 31
                %s994 = smul.u32 %s992, 32
                %s995 = smul.u32 4, %s994
                %s996 = scalar_lea.vmem %s779, %s995 [#allocation2]
                %s997 = smul.u32 4, %s994
                %s998 = scalar_lea.vmem %s791, %s997
                // While loop
                $region74: #{tpu_custom_call.1} parent=65 // loop_pre_header
                  _
                $region75: #{tpu_custom_call.1} parent=65 // loop_header
                  %s1000 = sphi 0, %s1002
                  %p1001 = scmp.ge.s32.totalorder %s1000, %s993
                  %s1005 = sphi 0, %s1012
                  %s1006 = sphi %s996, %s1015
                  %s1007 = sphi %s998, %s1016
                $region76: #{tpu_custom_call.1} parent=65 // loop_header_branch
                  %1004 = sbr.rel (%p1001) target = $region80
                $region77: #{tpu_custom_call.1} parent=65 // loop_body
                  %v1008 = vld [vmem:[%s1006] sm:%s910]
                  %1009 = vst [vmem:[%s1007] sm:%s910] %v1008
                  %s1010 = sadd.s32 1, %s1005
                  %p1011 = scmp.ge.s32.totalorder %s1010, %s993
                  %s1012 = scalar_select %p1011, 0, %s1010
                  %s1013 = smul.u32 %s1012, 4
                  %s1014 = smul.u32 %s1012, 4
                  %s1015 = scalar_lea.vmem %s996, %s1013 [#allocation2]
                  %s1016 = scalar_lea.vmem %s998, %s1014
                $region78: #{tpu_custom_call.1} parent=65 // loop_footer
                  %s1002 = sadd.s32 %s1000, 1
                $region79: #{tpu_custom_call.1} parent=65 // loop_footer_branch
                  %999 = sbr.rel target = $region75
                $region80: #{tpu_custom_call.1} parent=65 // loop_exit
                  _
              $region66: #{tpu_custom_call.1} parent=43 // pred_fallthru
                _
            $region44: #{tpu_custom_call.1} parent=39 // pred_fallthru
              _
            // Predicated region
            $region45: #{tpu_custom_call.1} parent=39 // pred_check
              _
            $region46: #{tpu_custom_call.1} parent=39 // pred_check_branch
              %798 = sbr.rel (0) target = $region48
            $region47: #{tpu_custom_call.1} parent=39 // pred_region
              %s800 = ssub.s32 16, 1
              %s801 = sshrl.u32 %s786, 5
              // While loop
              $region49: #{tpu_custom_call.1} parent=47 // loop_pre_header
                _
              $region50: #{tpu_custom_call.1} parent=47 // loop_header
                %s803 = sphi 0, %s805
                %p804 = scmp.ge.s32.totalorder %s803, %s801
                %s808 = sphi 0, %s877
                %s809 = sphi %s779, %s880
                %s810 = sphi %s791, %s881
              $region51: #{tpu_custom_call.1} parent=47 // loop_header_branch
                %807 = sbr.rel (%p804) target = $region55
              $region52: #{tpu_custom_call.1} parent=47 // loop_body
                %v811 = vld [vmem:[%s809] sm:%s800]
                %812 = vst [vmem:[%s810] sm:%s800] %v811
                %v813 = vld [vmem:[%s809 + $0x4] sm:%s800]
                %814 = vst [vmem:[%s810 + $0x4] sm:%s800] %v813
                %v815 = vld [vmem:[%s809 + $0x8] sm:%s800]
                %816 = vst [vmem:[%s810 + $0x8] sm:%s800] %v815
                %v817 = vld [vmem:[%s809 + $0xc] sm:%s800]
                %818 = vst [vmem:[%s810 + $0xc] sm:%s800] %v817
                %v819 = vld [vmem:[%s809 + $0x10] sm:%s800]
                %820 = vst [vmem:[%s810 + $0x10] sm:%s800] %v819
                %v821 = vld [vmem:[%s809 + $0x14] sm:%s800]
                %822 = vst [vmem:[%s810 + $0x14] sm:%s800] %v821
                %v823 = vld [vmem:[%s809 + $0x18] sm:%s800]
                %824 = vst [vmem:[%s810 + $0x18] sm:%s800] %v823
                %v825 = vld [vmem:[%s809 + $0x1c] sm:%s800]
                %826 = vst [vmem:[%s810 + $0x1c] sm:%s800] %v825
                %v827 = vld [vmem:[%s809 + $0x20] sm:%s800]
                %828 = vst [vmem:[%s810 + $0x20] sm:%s800] %v827
                %v829 = vld [vmem:[%s809 + $0x24] sm:%s800]
                %830 = vst [vmem:[%s810 + $0x24] sm:%s800] %v829
                %v831 = vld [vmem:[%s809 + $0x28] sm:%s800]
                %832 = vst [vmem:[%s810 + $0x28] sm:%s800] %v831
                %v833 = vld [vmem:[%s809 + $0x2c] sm:%s800]
                %834 = vst [vmem:[%s810 + $0x2c] sm:%s800] %v833
                %v835 = vld [vmem:[%s809 + $0x30] sm:%s800]
                %836 = vst [vmem:[%s810 + $0x30] sm:%s800] %v835
                %v837 = vld [vmem:[%s809 + $0x34] sm:%s800]
                %838 = vst [vmem:[%s810 + $0x34] sm:%s800] %v837
                %v839 = vld [vmem:[%s809 + $0x38] sm:%s800]
                %840 = vst [vmem:[%s810 + $0x38] sm:%s800] %v839
                %v841 = vld [vmem:[%s809 + $0x3c] sm:%s800]
                %842 = vst [vmem:[%s810 + $0x3c] sm:%s800] %v841
                %v843 = vld [vmem:[%s809 + $0x40] sm:%s800]
                %844 = vst [vmem:[%s810 + $0x40] sm:%s800] %v843
                %v845 = vld [vmem:[%s809 + $0x44] sm:%s800]
                %846 = vst [vmem:[%s810 + $0x44] sm:%s800] %v845
                %v847 = vld [vmem:[%s809 + $0x48] sm:%s800]
                %848 = vst [vmem:[%s810 + $0x48] sm:%s800] %v847
                %v849 = vld [vmem:[%s809 + $0x4c] sm:%s800]
                %850 = vst [vmem:[%s810 + $0x4c] sm:%s800] %v849
                %v851 = vld [vmem:[%s809 + $0x50] sm:%s800]
                %852 = vst [vmem:[%s810 + $0x50] sm:%s800] %v851
                %v853 = vld [vmem:[%s809 + $0x54] sm:%s800]
                %854 = vst [vmem:[%s810 + $0x54] sm:%s800] %v853
                %v855 = vld [vmem:[%s809 + $0x58] sm:%s800]
                %856 = vst [vmem:[%s810 + $0x58] sm:%s800] %v855
                %v857 = vld [vmem:[%s809 + $0x5c] sm:%s800]
                %858 = vst [vmem:[%s810 + $0x5c] sm:%s800] %v857
                %v859 = vld [vmem:[%s809 + $0x60] sm:%s800]
                %860 = vst [vmem:[%s810 + $0x60] sm:%s800] %v859
                %v861 = vld [vmem:[%s809 + $0x64] sm:%s800]
                %862 = vst [vmem:[%s810 + $0x64] sm:%s800] %v861
                %v863 = vld [vmem:[%s809 + $0x68] sm:%s800]
                %864 = vst [vmem:[%s810 + $0x68] sm:%s800] %v863
                %v865 = vld [vmem:[%s809 + $0x6c] sm:%s800]
                %866 = vst [vmem:[%s810 + $0x6c] sm:%s800] %v865
                %v867 = vld [vmem:[%s809 + $0x70] sm:%s800]
                %868 = vst [vmem:[%s810 + $0x70] sm:%s800] %v867
                %v869 = vld [vmem:[%s809 + $0x74] sm:%s800]
                %870 = vst [vmem:[%s810 + $0x74] sm:%s800] %v869
                %v871 = vld [vmem:[%s809 + $0x78] sm:%s800]
                %872 = vst [vmem:[%s810 + $0x78] sm:%s800] %v871
                %v873 = vld [vmem:[%s809 + $0x7c] sm:%s800]
                %874 = vst [vmem:[%s810 + $0x7c] sm:%s800] %v873
                %s875 = sadd.s32 1, %s808
                %p876 = scmp.ge.s32.totalorder %s875, %s801
                %s877 = scalar_select %p876, 0, %s875
                %s878 = smul.u32 %s877, 128
                %s879 = smul.u32 %s877, 128
                %s880 = scalar_lea.vmem %s779, %s878 [#allocation2]
                %s881 = scalar_lea.vmem %s791, %s879
              $region53: #{tpu_custom_call.1} parent=47 // loop_footer
                %s805 = sadd.s32 %s803, 1
              $region54: #{tpu_custom_call.1} parent=47 // loop_footer_branch
                %802 = sbr.rel target = $region50
              $region55: #{tpu_custom_call.1} parent=47 // loop_exit
                _
              %s882 = sshrl.u32 %s786, 5
              %s883 = sand.u32 %s786, 31
              %s884 = smul.u32 %s882, 32
              %s885 = smul.u32 4, %s884
              %s886 = scalar_lea.vmem %s779, %s885 [#allocation2]
              %s887 = smul.u32 4, %s884
              %s888 = scalar_lea.vmem %s791, %s887
              // While loop
              $region56: #{tpu_custom_call.1} parent=47 // loop_pre_header
                _
              $region57: #{tpu_custom_call.1} parent=47 // loop_header
                %s890 = sphi 0, %s892
                %p891 = scmp.ge.s32.totalorder %s890, %s883
                %s895 = sphi 0, %s902
                %s896 = sphi %s886, %s905
                %s897 = sphi %s888, %s906
              $region58: #{tpu_custom_call.1} parent=47 // loop_header_branch
                %894 = sbr.rel (%p891) target = $region62
              $region59: #{tpu_custom_call.1} parent=47 // loop_body
                %v898 = vld [vmem:[%s896] sm:%s800]
                %899 = vst [vmem:[%s897] sm:%s800] %v898
                %s900 = sadd.s32 1, %s895
                %p901 = scmp.ge.s32.totalorder %s900, %s883
                %s902 = scalar_select %p901, 0, %s900
                %s903 = smul.u32 %s902, 4
                %s904 = smul.u32 %s902, 4
                %s905 = scalar_lea.vmem %s886, %s903 [#allocation2]
                %s906 = scalar_lea.vmem %s888, %s904
              $region60: #{tpu_custom_call.1} parent=47 // loop_footer
                %s892 = sadd.s32 %s890, 1
              $region61: #{tpu_custom_call.1} parent=47 // loop_footer_branch
                %889 = sbr.rel target = $region57
              $region62: #{tpu_custom_call.1} parent=47 // loop_exit
                _
            $region48: #{tpu_custom_call.1} parent=39 // pred_fallthru
              _
          $region40: #{tpu_custom_call.1} parent=35 // pred_fallthru
            _
          %1017 = vnop
        $region36: #{tpu_custom_call.1} parent=31 // pred_fallthru
          _
      $region32: #{tpu_custom_call.1} parent=5 // pred_fallthru
        _
      %p1018 = scmp.le.s32.totalorder 2, %s9
      // Predicated region
      $region81: #{tpu_custom_call.1} parent=5 // pred_check
        %p1019 = pneg %p1018
      $region82: #{tpu_custom_call.1} parent=5 // pred_check_branch
        %1021 = sbr.rel (%p1019) target = $region84
      $region83: #{tpu_custom_call.1} parent=5 // pred_region
        %s1022 = ssub.s32 %s9, 2
        // Predicated region
        $region85: #{tpu_custom_call.1} parent=83 // pred_check
          %p1023 = pneg %p130
        $region86: #{tpu_custom_call.1} parent=83 // pred_check_branch
          %1025 = sbr.rel (%p1023) target = $region88
        $region87: #{tpu_custom_call.1} parent=83 // pred_region
          %s1026 = sand.u32 %s115, 1
          %s1027 = sand.u32 %s115, 1
          %s1028 = smul.addr %s1027, 128
          %s1029 = scalar_lea.vmem [#allocation2], %s1028
        $region88: #{tpu_custom_call.1} parent=83 // pred_fallthru
          _
      $region84: #{tpu_custom_call.1} parent=5 // pred_fallthru
        _
    $region6: #{tpu_custom_call.1} parent=1 // loop_footer
      %s13 = sadd.s32 1, %s9
    $region7: #{tpu_custom_call.1} parent=1 // loop_footer_branch
      %8 = sbr.rel target = $region3
    $region8: #{tpu_custom_call.1} parent=1 // loop_exit
      _

</llo_original>
